<compile_context>
chip_gen: v7x
topology: tpu7x:2x2x1
jax: 0.10.0
libtpu: 0.0.40
codegen_flags: <defaults>
</compile_context>

<pallas_src>
import functools

import jax
import jax.numpy as jnp
import numpy as np
from jax import lax
from jax.experimental import pallas as pl
from jax.experimental.pallas import tpu as pltpu


# ----------------------------------------------------------------------------
# helpers
# ----------------------------------------------------------------------------
def _pick_tile(n, target):
    """Largest tile <= target that divides n and is a multiple of 8 (else n)."""
    if n <= target:
        return n
    for t in range(target - target % 8, 7, -8):
        if n % t == 0:
            return t
    return n


def _vmem_limit_bytes():
    """Scoped-VMEM limit with per-generation headroom (v7x physical = 64 MiB)."""
    cap = 64 * 1024 * 1024                       # conservative fallback
    try:
        cap = int(pltpu.get_tpu_info().vmem_capacity_bytes)
    except Exception:
        pass
    return max(32 * 1024 * 1024, min(100 * 1024 * 1024, (cap * 3) // 4))


# ----------------------------------------------------------------------------
# stage 1: RMSNorm + fused QKV / gate projection
# ----------------------------------------------------------------------------
def _norm_qkv_kernel(x_ref, gamma_ref, w_fused_ref, bg_ref,
                     q_ref, k_ref, v_ref, g_ref, *, dim_inner):
    x = x_ref[0]                                                   # (tn, D) f32
    ssq = jnp.sum(x * x, axis=-1, keepdims=True)
    # RMSNorm: x / max(||x||, 1e-12) * sqrt(D) * gamma  (gamma pre-scaled).
    xn = x * lax.rsqrt(jnp.maximum(ssq, 1e-24)) * gamma_ref[...]
    # One MXU matmul -> [ q*scale | k | v | gate_logits (padded to 128) ].
    fused = jnp.dot(xn.astype(jnp.bfloat16), w_fused_ref[...],
                    preferred_element_type=jnp.float32)            # (tn, 3*HD+Gpad)
    # Slice+cast straight from the f32 result (no duplicate bf16 copy live).
    q_ref[0] = fused[:, 0 * dim_inner:1 * dim_inner].astype(jnp.bfloat16)
    k_ref[0] = fused[:, 1 * dim_inner:2 * dim_inner].astype(jnp.bfloat16)
    v_ref[0] = fused[:, 2 * dim_inner:3 * dim_inner].astype(jnp.bfloat16)
    g_ref[0] = jax.nn.sigmoid(fused[:, 3 * dim_inner:] + bg_ref[...])


# ----------------------------------------------------------------------------
# stage 2: flash attention + head gates + output projection
# ----------------------------------------------------------------------------
def _expand_head_cols(cols, dim_head):
    """(tq, H) -> (tq, H*Dh): repeat each head column across its Dh lanes."""
    tq = cols.shape[0]
    return jnp.concatenate(
        [jnp.broadcast_to(cols[:, h:h + 1], (tq, dim_head))
         for h in range(cols.shape[1])], axis=1)


def _flash_attn_kernel(q_ref, k_ref, v_ref, g_ref, wo_ref, o_ref,
                       m_scr, l_scr, acc_scr, *, heads, dim_head):
    ki = pl.program_id(2)

    @pl.when(ki == 0)
    def _():
        m_scr[...] = jnp.full(m_scr.shape, -jnp.inf, dtype=m_scr.dtype)
        l_scr[...] = jnp.zeros(l_scr.shape, dtype=l_scr.dtype)
        acc_scr[...] = jnp.zeros(acc_scr.shape, dtype=acc_scr.dtype)

    q = q_ref[0]                     # (tq,  H*Dh) bf16 (attn scale folded in)
    k = k_ref[0]                     # (tkv, H*Dh) bf16
    v = v_ref[0]                     # (tkv, H*Dh) bf16
    m_prev = m_scr[...]              # (tq, H) f32

    # Per-head scores / exp / PV; partial results are collected and committed
    # below with whole-array (lane-dense) scratch updates.
    # TODO(synk): once dim_head*group hits 128 lanes, switch this static unroll
    # to a head-batched dot_general / lax.fori_loop.
    m_cols, rs_cols, o_cols = [], [], []
    for h in range(heads):
        lo = h * dim_head
        q_h = q[:, lo:lo + dim_head]
        k_h = k[:, lo:lo + dim_head]
        v_h = v[:, lo:lo + dim_head]
        # q @ k^T without an explicit transpose (contract last dims).
        s = lax.dot_general(q_h, k_h, (((1,), (1,)), ((), ())),
                            preferred_element_type=jnp.float32)    # (tq, tkv)
        m_h = jnp.maximum(m_prev[:, h:h + 1],
                          jnp.max(s, axis=-1, keepdims=True))      # (tq, 1)
        p = jnp.exp(s - m_h)                                        # (tq, tkv)
        rs_cols.append(jnp.sum(p, axis=-1, keepdims=True))
        o_cols.append(jnp.dot(p.astype(jnp.bfloat16), v_h,
                              preferred_element_type=jnp.float32))  # (tq, Dh)
        m_cols.append(m_h)

    m_new = jnp.concatenate(m_cols, axis=1)                         # (tq, H)
    alpha = jnp.exp(m_prev - m_new)                                 # (tq, H)
    l_scr[...] = alpha * l_scr[...] + jnp.concatenate(rs_cols, axis=1)
    acc_scr[...] = (acc_scr[...] * _expand_head_cols(alpha, dim_head)
                    + jnp.concatenate(o_cols, axis=1))
    m_scr[...] = m_new

    @pl.when(ki == pl.num_programs(2) - 1)
    def _():
        gate = g_ref[0][:, :heads]                                  # (tq, H) f32
        inv_l = pl.reciprocal(l_scr[...], approx=True)              # (tq, H)
        scale = _expand_head_cols(gate * inv_l, dim_head)           # (tq, H*Dh)
        gated = (acc_scr[...] * scale).astype(jnp.bfloat16)
        o_ref[0] = jnp.dot(gated, wo_ref[...],
                           preferred_element_type=jnp.float32)      # (tq, D)


# ----------------------------------------------------------------------------
# wrapper
# ----------------------------------------------------------------------------
def attention_forward(x, gamma, w_qkv, w_gates, b_gates, w_out, *,
                      heads, dim_head, seq_tile=256, q_tile=256, kv_tile=256):
    """x: (B, N, D) float32 -> (B, N, D) float32."""
    b, n, d = x.shape
    dim_inner = heads * dim_head
    assert w_qkv.shape == (3 * dim_inner, d)
    assert w_gates.shape == (heads, d)
    assert b_gates.shape == (heads,)
    assert w_out.shape == (d, dim_inner)

    f32, bf16 = jnp.float32, jnp.bfloat16
    gpad = ((heads + 127) // 128) * 128        # gate block padded to 128 lanes

    # ---- wrapper-side parameter prep ----------------------------------------
    attn_scale = float(dim_head) ** -0.5
    w_qkv_s = jnp.concatenate(
        [w_qkv[:dim_inner].astype(f32) * attn_scale,   # fold attn scale into Wq
         w_qkv[dim_inner:].astype(f32)], axis=0)
    w_g_pad = jnp.zeros((gpad, d), f32).at[:heads].set(w_gates.astype(f32))
    w_fused = jnp.concatenate([w_qkv_s, w_g_pad], axis=0).T.astype(bf16)  # (D, 3HD+gpad)
    bg_pad = jnp.zeros((1, gpad), f32).at[0, :heads].set(b_gates.astype(f32))
    w_out_t = w_out.astype(f32).T.astype(bf16)                            # (HD, D)
    gamma_s = (gamma.astype(f32) * float(d) ** 0.5).reshape(1, d)

    tn = _pick_tile(n, seq_tile)
    tq = _pick_tile(n, q_tile)
    tkv = _pick_tile(n, kv_tile)
    n_n, n_q, n_kv = n // tn, n // tq, n // tkv
    vmem_limit = _vmem_limit_bytes()
    qkv_width = 3 * dim_inner + gpad

    # ---- stage 1: RMSNorm + fused QKV / gate projection ----------------------
    q, k, v, gates = pl.pallas_call(
        functools.partial(_norm_qkv_kernel, dim_inner=dim_inner),
        out_shape=(
            jax.ShapeDtypeStruct((b, n, dim_inner), bf16),
            jax.ShapeDtypeStruct((b, n, dim_inner), bf16),
            jax.ShapeDtypeStruct((b, n, dim_inner), bf16),
            jax.ShapeDtypeStruct((b, n, gpad), f32),
        ),
        grid_spec=pltpu.PrefetchScalarGridSpec(
            num_scalar_prefetch=0,
            grid=(b, n_n),
            in_specs=[
                pl.BlockSpec((1, tn, d), lambda i, j: (i, j, 0)),          # x
                pl.BlockSpec((1, d), lambda i, j: (0, 0)),                 # sqrt(D)*gamma
                pl.BlockSpec((d, qkv_width), lambda i, j: (0, 0)),         # [Wq*s|Wk|Wv|Wg pad]
                pl.BlockSpec((1, gpad), lambda i, j: (0, 0)),              # gate bias (pad)
            ],
            out_specs=[
                pl.BlockSpec((1, tn, dim_inner), lambda i, j: (i, j, 0)),  # q
                pl.BlockSpec((1, tn, dim_inner), lambda i, j: (i, j, 0)),  # k
                pl.BlockSpec((1, tn, dim_inner), lambda i, j: (i, j, 0)),  # v
                pl.BlockSpec((1, tn, gpad), lambda i, j: (i, j, 0)),       # gates
            ],
        ),
        compiler_params=pltpu.CompilerParams(
            dimension_semantics=("parallel", "parallel"),
            vmem_limit_bytes=vmem_limit),
        cost_estimate=pl.CostEstimate(
            flops=int(2 * b * n * d * qkv_width),
            transcendentals=int(b * n * (gpad + 1)),
            bytes_accessed=int(b * n * d * 4 + 3 * b * n * dim_inner * 2
                               + b * n * gpad * 4 + d * qkv_width * 2)),
    )(x, gamma_s, w_fused, bg_pad)

    # ---- stage 2: flash attention + head gates + output projection -----------
    out = pl.pallas_call(
        functools.partial(_flash_attn_kernel, heads=heads, dim_head=dim_head),
        out_shape=jax.ShapeDtypeStruct((b, n, d), f32),
        grid_spec=pltpu.PrefetchScalarGridSpec(
            num_scalar_prefetch=0,
            grid=(b, n_q, n_kv),
            in_specs=[
                pl.BlockSpec((1, tq, dim_inner), lambda bb, qi, ki: (bb, qi, 0)),   # q
                pl.BlockSpec((1, tkv, dim_inner), lambda bb, qi, ki: (bb, ki, 0)),  # k
                pl.BlockSpec((1, tkv, dim_inner), lambda bb, qi, ki: (bb, ki, 0)),  # v
                pl.BlockSpec((1, tq, gpad), lambda bb, qi, ki: (bb, qi, 0)),        # gates
                pl.BlockSpec((dim_inner, d), lambda bb, qi, ki: (0, 0)),            # Wout^T
            ],
            out_specs=pl.BlockSpec((1, tq, d), lambda bb, qi, ki: (bb, qi, 0)),
            scratch_shapes=[
                pltpu.VMEM((tq, heads), f32),       # running max m
                pltpu.VMEM((tq, heads), f32),       # running sum l
                pltpu.VMEM((tq, dim_inner), f32),   # output accumulator
            ],
        ),
        compiler_params=pltpu.CompilerParams(
            dimension_semantics=("parallel", "parallel", "arbitrary"),
            vmem_limit_bytes=vmem_limit),
        cost_estimate=pl.CostEstimate(
            flops=int(4 * b * heads * n * n * dim_head + 2 * b * n * dim_inner * d),
            transcendentals=int(b * heads * n * n + b * n * heads),
            bytes_accessed=int(b * n * dim_inner * 2 * (1 + 2 * n_q)
                               + b * n * gpad * 4 + b * n * d * 4
                               + dim_inner * d * 2)),
    )(q, k, v, gates, w_out_t)
    return out


# ----------------------------------------------------------------------------
# pure-JAX f32 reference mirroring the PyTorch forward
# ----------------------------------------------------------------------------
def _reference(x, gamma, w_qkv, w_gates, b_gates, w_out, *, heads, dim_head):
    b, n, d = x.shape
    hd = heads * dim_head
    l2 = jnp.sqrt(jnp.sum(x * x, axis=-1, keepdims=True))
    xn = x / jnp.maximum(l2, 1e-12) * (d ** 0.5) * gamma
    qkv = xn @ w_qkv.T                                              # (B, N, 3*H*Dh)
    qkv = qkv.reshape(b, n, 3, heads, dim_head)
    q = jnp.transpose(qkv[:, :, 0], (0, 2, 1, 3))                   # (B, H, N, Dh)
    k = jnp.transpose(qkv[:, :, 1], (0, 2, 1, 3))
    v = jnp.transpose(qkv[:, :, 2], (0, 2, 1, 3))
    s = jnp.einsum('bhnd,bhmd->bhnm', q, k) * (dim_head ** -0.5)
    p = jax.nn.softmax(s, axis=-1)
    out = jnp.einsum('bhnm,bhmd->bhnd', p, v)                       # (B, H, N, Dh)
    gates = jax.nn.sigmoid(xn @ w_gates.T + b_gates)                # (B, N, H)
    out = out * jnp.transpose(gates, (0, 2, 1))[..., None]
    out = jnp.transpose(out, (0, 2, 1, 3)).reshape(b, n, hd)
    return out @ w_out.T


if __name__ == "__main__":
    # Small, module-consistent shapes.
    B, N, DIM = 2, 8, 32
    HEADS, DIM_HEAD = 4, 16

    key = jax.random.PRNGKey(0)
    kx, k1, k2, k3, k4 = jax.random.split(key, 5)

    x = jax.random.normal(kx, (B, N, DIM), dtype=jnp.float32)

    # Deterministic synthetic parameters (PyTorch Linear convention: W is (out, in)).
    gamma = jnp.ones((DIM,), dtype=jnp.float32)                                     # RMSNorm.gamma
    w_qkv = 0.05 * jax.random.normal(k1, (3 * HEADS * DIM_HEAD, DIM), dtype=jnp.float32)  # to_qkv
    w_gates = 0.05 * jax.random.normal(k2, (HEADS, DIM), dtype=jnp.float32)         # to_gates weight
    b_gates = 0.05 * jax.random.normal(k3, (HEADS,), dtype=jnp.float32)             # to_gates bias
    w_out = 0.05 * jax.random.normal(k4, (DIM, HEADS * DIM_HEAD), dtype=jnp.float32)  # to_out[0]

    out = attention_forward(x, gamma, w_qkv, w_gates, b_gates, w_out,
                            heads=HEADS, dim_head=DIM_HEAD)
    out = jax.block_until_ready(out)

    ref = _reference(x, gamma, w_qkv, w_gates, b_gates, w_out,
                     heads=HEADS, dim_head=DIM_HEAD)
    # bf16 MXU inputs -> relaxed tolerance vs. the f32 reference.
    np.testing.assert_allclose(np.asarray(out), np.asarray(ref), rtol=5e-2, atol=5e-3)

    print("KERNEL_OK")
</pallas_src>

<mosaic_0001>
module attributes {stable_mosaic.version = 11 : i64} {
  func.func @_norm_qkv_kernel(%arg0: i32, %arg1: i32, %arg2: memref<1x8x32xf32, #tpu.memory_space<vmem>>, %arg3: memref<1x32xf32, #tpu.memory_space<vmem>>, %arg4: memref<32x320xbf16, #tpu.memory_space<vmem>>, %arg5: memref<1x128xf32, #tpu.memory_space<vmem>>, %arg6: memref<1x8x64xbf16, #tpu.memory_space<vmem>>, %arg7: memref<1x8x64xbf16, #tpu.memory_space<vmem>>, %arg8: memref<1x8x64xbf16, #tpu.memory_space<vmem>>, %arg9: memref<1x8x128xf32, #tpu.memory_space<vmem>>) attributes {dimension_semantics = [#tpu.dimension_semantics<parallel>, #tpu.dimension_semantics<parallel>], iteration_bounds = array<i64: 2, 1>, scalar_prefetch = 0 : i64, scratch_operands = 0 : i64, tpu.core_type = #tpu.core_type<tc>, window_params = [{transform_indices = @transform_0, window_bounds = array<i64: 1, 8, 32>}, {pipeline_mode = #tpu.pipeline_mode<synchronous>, transform_indices = @transform_1, window_bounds = array<i64: 1, 32>}, {pipeline_mode = #tpu.pipeline_mode<synchronous>, transform_indices = @transform_2, window_bounds = array<i64: 32, 320>}, {pipeline_mode = #tpu.pipeline_mode<synchronous>, transform_indices = @transform_3, window_bounds = array<i64: 1, 128>}, {transform_indices = @transform_4, window_bounds = array<i64: 1, 8, 64>}, {transform_indices = @transform_5, window_bounds = array<i64: 1, 8, 64>}, {transform_indices = @transform_6, window_bounds = array<i64: 1, 8, 64>}, {transform_indices = @transform_7, window_bounds = array<i64: 1, 8, 128>}]} {
    %c0 = arith.constant 0 : index
    %c0_0 = arith.constant 0 : index
    %c0_1 = arith.constant 0 : index
    %0 = vector.load %arg2[%c0, %c0_0, %c0_1] : memref<1x8x32xf32, #tpu.memory_space<vmem>>, vector<1x8x32xf32>
    %1 = vector.shape_cast %0 : vector<1x8x32xf32> to vector<8x32xf32>
    %2 = arith.mulf %1, %1 : vector<8x32xf32>
    %cst = arith.constant dense<0.000000e+00> : vector<8xf32>
    %3 = vector.multi_reduction <add>, %2, %cst [1] : vector<8x32xf32> to vector<8xf32>
    %4 = vector.shape_cast %3 : vector<8xf32> to vector<8x1xf32>
    %cst_2 = arith.constant 1.000000e-24 : f32
    %5 = vector.broadcast %cst_2 : f32 to vector<8x1xf32>
    %6 = arith.maximumf %4, %5 : vector<8x1xf32>
    %7 = math.rsqrt %6 : vector<8x1xf32>
    %8 = vector.broadcast %7 : vector<8x1xf32> to vector<8x32xf32>
    %9 = arith.mulf %1, %8 : vector<8x32xf32>
    %c0_3 = arith.constant 0 : index
    %c0_4 = arith.constant 0 : index
    %10 = vector.load %arg3[%c0_3, %c0_4] : memref<1x32xf32, #tpu.memory_space<vmem>>, vector<1x32xf32>
    %11 = vector.broadcast %10 : vector<1x32xf32> to vector<8x32xf32>
    %12 = arith.mulf %9, %11 : vector<8x32xf32>
    %13 = arith.truncf %12 : vector<8x32xf32> to vector<8x32xbf16>
    %c0_5 = arith.constant 0 : index
    %c0_6 = arith.constant 0 : index
    %14 = vector.load %arg4[%c0_5, %c0_6] : memref<32x320xbf16, #tpu.memory_space<vmem>>, vector<32x320xbf16>
    %cst_7 = arith.constant dense<0.000000e+00> : vector<8x320xf32>
    %15 = tpu.matmul %13, %14, %cst_7 {dimension_numbers = #tpu.dot_dimension_numbers<[1], [0], [0], [1], [0, 0, 1, 1], [], []>} : vector<8x32xbf16>, vector<32x320xbf16>, vector<8x320xf32> -> vector<8x320xf32>
    %16 = vector.extract_strided_slice %15 {offsets = [0, 0], sizes = [8, 64], strides = [1, 1]} : vector<8x320xf32> to vector<8x64xf32>
    %17 = arith.truncf %16 : vector<8x64xf32> to vector<8x64xbf16>
    %c0_8 = arith.constant 0 : index
    %c0_9 = arith.constant 0 : index
    %c0_10 = arith.constant 0 : index
    %18 = vector.load %arg6[%c0_8, %c0_9, %c0_10] : memref<1x8x64xbf16, #tpu.memory_space<vmem>>, vector<1x8x64xbf16>
    %19 = vector.shape_cast %18 : vector<1x8x64xbf16> to vector<8x64xbf16>
    %20 = vector.shape_cast %17 : vector<8x64xbf16> to vector<1x8x64xbf16>
    tpu.vector_store %arg6[%c0_8, %c0_9, %c0_10], %20 {strides = array<i32>} : memref<1x8x64xbf16, #tpu.memory_space<vmem>>, vector<1x8x64xbf16>,
    %21 = vector.extract_strided_slice %15 {offsets = [0, 64], sizes = [8, 64], strides = [1, 1]} : vector<8x320xf32> to vector<8x64xf32>
    %22 = arith.truncf %21 : vector<8x64xf32> to vector<8x64xbf16>
    %c0_11 = arith.constant 0 : index
    %c0_12 = arith.constant 0 : index
    %c0_13 = arith.constant 0 : index
    %23 = vector.load %arg7[%c0_11, %c0_12, %c0_13] : memref<1x8x64xbf16, #tpu.memory_space<vmem>>, vector<1x8x64xbf16>
    %24 = vector.shape_cast %23 : vector<1x8x64xbf16> to vector<8x64xbf16>
    %25 = vector.shape_cast %22 : vector<8x64xbf16> to vector<1x8x64xbf16>
    tpu.vector_store %arg7[%c0_11, %c0_12, %c0_13], %25 {strides = array<i32>} : memref<1x8x64xbf16, #tpu.memory_space<vmem>>, vector<1x8x64xbf16>,
    %26 = vector.extract_strided_slice %15 {offsets = [0, 128], sizes = [8, 64], strides = [1, 1]} : vector<8x320xf32> to vector<8x64xf32>
    %27 = arith.truncf %26 : vector<8x64xf32> to vector<8x64xbf16>
    %c0_14 = arith.constant 0 : index
    %c0_15 = arith.constant 0 : index
    %c0_16 = arith.constant 0 : index
    %28 = vector.load %arg8[%c0_14, %c0_15, %c0_16] : memref<1x8x64xbf16, #tpu.memory_space<vmem>>, vector<1x8x64xbf16>
    %29 = vector.shape_cast %28 : vector<1x8x64xbf16> to vector<8x64xbf16>
    %30 = vector.shape_cast %27 : vector<8x64xbf16> to vector<1x8x64xbf16>
    tpu.vector_store %arg8[%c0_14, %c0_15, %c0_16], %30 {strides = array<i32>} : memref<1x8x64xbf16, #tpu.memory_space<vmem>>, vector<1x8x64xbf16>,
    %31 = vector.extract_strided_slice %15 {offsets = [0, 192], sizes = [8, 128], strides = [1, 1]} : vector<8x320xf32> to vector<8x128xf32>
    %c0_17 = arith.constant 0 : index
    %c0_18 = arith.constant 0 : index
    %32 = vector.load %arg5[%c0_17, %c0_18] : memref<1x128xf32, #tpu.memory_space<vmem>>, vector<1x128xf32>
    %33 = vector.broadcast %32 : vector<1x128xf32> to vector<8x128xf32>
    %34 = arith.addf %31, %33 : vector<8x128xf32>
    %35 = arith.negf %34 : vector<8x128xf32>
    %36 = math.exp %35 : vector<8x128xf32>
    %cst_19 = arith.constant 1.000000e+00 : f32
    %37 = vector.broadcast %cst_19 : f32 to vector<8x128xf32>
    %38 = arith.addf %37, %36 : vector<8x128xf32>
    %39 = arith.divf %37, %38 : vector<8x128xf32>
    %c0_20 = arith.constant 0 : index
    %c0_21 = arith.constant 0 : index
    %c0_22 = arith.constant 0 : index
    %40 = vector.load %arg9[%c0_20, %c0_21, %c0_22] : memref<1x8x128xf32, #tpu.memory_space<vmem>>, vector<1x8x128xf32>
    %41 = vector.shape_cast %40 : vector<1x8x128xf32> to vector<8x128xf32>
    %42 = vector.shape_cast %39 : vector<8x128xf32> to vector<1x8x128xf32>
    tpu.vector_store %arg9[%c0_20, %c0_21, %c0_22], %42 {strides = array<i32>} : memref<1x8x128xf32, #tpu.memory_space<vmem>>, vector<1x8x128xf32>,
    return
  }
  func.func @transform_0(%arg0: i32, %arg1: i32) -> (i32, i32, i32) {
    %c0_i32 = arith.constant 0 : i32
    %c0_i32_0 = arith.constant 0 : i32
    return %arg0, %arg1, %c0_i32 : i32, i32, i32
  }
  func.func @transform_1(%arg0: i32, %arg1: i32) -> (i32, i32) {
    %c0_i32 = arith.constant 0 : i32
    %c0_i32_0 = arith.constant 0 : i32
    %c0_i32_1 = arith.constant 0 : i32
    return %c0_i32, %c0_i32_0 : i32, i32
  }
  func.func @transform_2(%arg0: i32, %arg1: i32) -> (i32, i32) {
    %c0_i32 = arith.constant 0 : i32
    %c0_i32_0 = arith.constant 0 : i32
    %c0_i32_1 = arith.constant 0 : i32
    return %c0_i32, %c0_i32_0 : i32, i32
  }
  func.func @transform_3(%arg0: i32, %arg1: i32) -> (i32, i32) {
    %c0_i32 = arith.constant 0 : i32
    %c0_i32_0 = arith.constant 0 : i32
    %c0_i32_1 = arith.constant 0 : i32
    return %c0_i32, %c0_i32_0 : i32, i32
  }
  func.func @transform_4(%arg0: i32, %arg1: i32) -> (i32, i32, i32) {
    %c0_i32 = arith.constant 0 : i32
    %c0_i32_0 = arith.constant 0 : i32
    return %arg0, %arg1, %c0_i32 : i32, i32, i32
  }
  func.func @transform_5(%arg0: i32, %arg1: i32) -> (i32, i32, i32) {
    %c0_i32 = arith.constant 0 : i32
    %c0_i32_0 = arith.constant 0 : i32
    return %arg0, %arg1, %c0_i32 : i32, i32, i32
  }
  func.func @transform_6(%arg0: i32, %arg1: i32) -> (i32, i32, i32) {
    %c0_i32 = arith.constant 0 : i32
    %c0_i32_0 = arith.constant 0 : i32
    return %arg0, %arg1, %c0_i32 : i32, i32, i32
  }
  func.func @transform_7(%arg0: i32, %arg1: i32) -> (i32, i32, i32) {
    %c0_i32 = arith.constant 0 : i32
    %c0_i32_0 = arith.constant 0 : i32
    return %arg0, %arg1, %c0_i32 : i32, i32, i32
  }
}

</mosaic_0001>

<llo_original>
// kernel: tpu_custom_call.1
$region0: #{tpu_custom_call.1}
  #allocation0 [shape = 'u32[]', space=smem, size = 0x4, offset = 0x4, fixed_abs, tag = 'smem constant byte address 0x4 - core index']
  #allocation1 [shape = 'u32[144,128]{1,0:T(1,128)}', space=vmem, size = 0x12000, scoped, tag = 'internal scratch']
  %s0 = inlined_call_operand.hbm [shape: f32[2,8,32], index: 0, kind: input, shape index: {}]
  %s1 = inlined_call_operand.vmem [shape: f32[1,32], index: 1, kind: input, shape index: {}]
  %s2 = inlined_call_operand.hbm [shape: bf16[32,320], index: 2, kind: input, shape index: {}]
  %s3 = inlined_call_operand.vmem [shape: f32[1,128], index: 3, kind: input, shape index: {}]
  %s4 = inlined_call_operand.hbm [shape: bf16[2,8,64], index: 4, kind: output, shape index: {0}]
  %s5 = inlined_call_operand.hbm [shape: bf16[2,8,64], index: 5, kind: output, shape index: {1}]
  %s6 = inlined_call_operand.hbm [shape: bf16[2,8,64], index: 6, kind: output, shape index: {2}]
  %s7 = inlined_call_operand.hbm [shape: f32[2,8,128], index: 7, kind: output, shape index: {3}]
  %8 = xla_tuple %s4, %s5, %s6, %s7
  %s9 = sld [smem:[#allocation0]]
  $region81: #{tpu_custom_call.1} parent=0
    _
  %s11 = ssub.s32 1, %s9
  %s12 = scalar_select 0, %s11, %s9
  $region1: #{tpu_custom_call.1} parent=0
    #allocation2 [shape = 'u8[8192]{0}', space=vmem, size = 0x2000, scoped, tag = 'input window, operand 0']
    #allocation3 [shape = 's32[2]{0}', space=sflag, size = 0x8, scoped, tag = 'scoped memory for tpu_custom_call.1']
    #allocation4 [shape = 's32[2]{0}', space=sflag, size = 0x8, scoped, tag = 'scoped memory for tpu_custom_call.1']
    #allocation5 [shape = 'u8[24576]{0}', space=vmem, size = 0x6000, scoped, tag = 'input window, operand 2, single buffered']
    #allocation6 [shape = 's32[1]{0}', space=sflag, size = 0x4, scoped, tag = 'scoped memory for tpu_custom_call.1']
    #allocation7 [shape = 'u8[4096]{0}', space=vmem, size = 0x1000, scoped, tag = 'output window, operand 0']
    #allocation8 [shape = 'u8[4096]{0}', space=vmem, size = 0x1000, scoped, tag = 'output window, operand 1']
    #allocation9 [shape = 's32[2]{0}', space=sflag, size = 0x8, scoped, tag = 'scoped memory for tpu_custom_call.1']
    #allocation10 [shape = 'u8[4096]{0}', space=vmem, size = 0x1000, scoped, tag = 'output window, operand 2']
    #allocation11 [shape = 'u8[8192]{0}', space=vmem, size = 0x2000, scoped, tag = 'output window, operand 3']
    #allocation12 [shape = 's32[2]{0}', space=sflag, size = 0x8, scoped, tag = 'scoped memory for tpu_custom_call.1']
    %13 = vsyncpa [#allocation3], 0
    %s14 = scalar_lea.sflag [#allocation3], 1
    %15 = vsyncpa %s14, 0
    %16 = vsyncpa [#allocation6], 0
    %17 = vsyncpa [#allocation4], 0
    %s18 = scalar_lea.sflag [#allocation4], 1
    %19 = vsyncpa %s18, 0
    %20 = vsyncpa [#allocation9], 0
    %s21 = scalar_lea.sflag [#allocation9], 1
    %22 = vsyncpa %s21, 0
    %23 = vsyncpa [#allocation12], 0
    %s24 = scalar_lea.sflag [#allocation12], 1
    %25 = vsyncpa %s24, 0
    loop: start=0, step=1, limit=4
    $region2: #{tpu_custom_call.1} parent=1 // loop_pre_header
      _
    $region3: #{tpu_custom_call.1} parent=1 // loop_header
      %s27 = sphi 0, %s31
      %p28 = scmp.ge.s32.totalorder %s27, 4
      %s34 = sphi 0, %s46
      %s35 = sphi 0, %s42
      %s36 = sphi 0, %s34
      %s37 = sphi 0, %s35
      %s38 = sphi 0, %s36
      %s39 = sphi 0, %s37
      %s51 = sphi 0, %s53
      %s54 = sphi 0, %s51
      %s55 = sphi 0, %s54
      %s71 = sphi 0, %s55
      %s75 = sphi 0, %s75
      %s77 = sphi 0, %s75
      %s78 = sphi 0, %s77
      %s92 = sphi 0, %s78
      %s96 = sphi 0, %s96
      %s98 = sphi 0, %s96
      %s99 = sphi 0, %s98
      %s113 = sphi 0, %s99
      %s117 = sphi 0, %s117
      %s119 = sphi 0, %s117
      %s120 = sphi 0, %s119
      %s134 = sphi 0, %s120
      %s142 = sphi 0, %s144
      %s145 = sphi 0, %s142
      %s146 = sphi 0, %s145
      %s162 = sphi 0, %s146
      %s170 = sphi 0, %s172
      %s173 = sphi 0, %s170
      %s174 = sphi 0, %s173
      %s190 = sphi 0, %s174
      %s198 = sphi 0, %s200
      %s201 = sphi 0, %s198
      %s202 = sphi 0, %s201
      %s218 = sphi 0, %s202
      %s226 = sphi 0, %s228
      %s229 = sphi 0, %s226
      %s230 = sphi 0, %s229
      %s246 = sphi 0, %s230
    $region4: #{tpu_custom_call.1} parent=1 // loop_header_branch
      %30 = sbr.rel (%p28) target = $region8
    $region5: #{tpu_custom_call.1} parent=1 // loop_body
      %s32 = ssub.s32 %s27, 1
      %s33 = ssub.s32 %s27, 2
      %s40 = sadd.s32 1, %s35
      %p41 = scmp.ge.s32.totalorder %s40, 1
      %s42 = scalar_select %p41, 0, %s40
      %s43 = sadd.s32 1, %s34
      %s44 = scalar_select %p41, %s43, %s34
      %p45 = scmp.ge.s32.totalorder %s44, 2
      %s46 = scalar_select %p45, 0, %s44
      %s47 = ssub.s32 %s34, %s46
      %s48 = ssub.s32 %s35, %s42
      %s49 = sor.u32 %s47, %s48
      %p50 = scmp.eq.s32.totalorder %s49, 0
      %s52 = sadd.s32 %s51, 1
      %s53 = scalar_select %p50, %s51, %s52
      %p56 = pneg %p50
      %p57 = scmp.eq.s32.totalorder %s27, 1
      %p58 = por %p56, %p57
      %p59 = scmp.ne.s32.totalorder %s51, %s54
      %p60 = scmp.eq.s32.totalorder %s27, 0
      %p61 = por %p59, %p60
      %p62 = scmp.ne.s32.totalorder %s51, %s54
      %p63 = scmp.eq.s32.totalorder %s32, 1
      %p64 = por %p62, %p63
      %p65 = scmp.ne.s32.totalorder %s54, %s55
      %p66 = scmp.eq.s32.totalorder %s32, 0
      %p67 = por %p65, %p66
      %p68 = scmp.ne.s32.totalorder %s54, %s55
      %p69 = scmp.eq.s32.totalorder %s33, 1
      %p70 = por %p68, %p69
      %p72 = scmp.ne.s32.totalorder %s55, %s71
      %p73 = scmp.eq.s32.totalorder %s33, 0
      %p74 = por %p72, %p73
      %s76 = sadd.s32 %s75, 1
      %p79 = scmp.eq.s32.totalorder %s27, 1
      %p80 = scmp.ne.s32.totalorder %s75, %s77
      %p81 = scmp.eq.s32.totalorder %s27, 0
      %p82 = por %p80, %p81
      %p83 = scmp.ne.s32.totalorder %s75, %s77
      %p84 = scmp.eq.s32.totalorder %s32, 1
      %p85 = por %p83, %p84
      %p86 = scmp.ne.s32.totalorder %s77, %s78
      %p87 = scmp.eq.s32.totalorder %s32, 0
      %p88 = por %p86, %p87
      %p89 = scmp.ne.s32.totalorder %s77, %s78
      %p90 = scmp.eq.s32.totalorder %s33, 1
      %p91 = por %p89, %p90
      %p93 = scmp.ne.s32.totalorder %s78, %s92
      %p94 = scmp.eq.s32.totalorder %s33, 0
      %p95 = por %p93, %p94
      %s97 = sadd.s32 %s96, 1
      %p100 = scmp.eq.s32.totalorder %s27, 1
      %p101 = scmp.ne.s32.totalorder %s96, %s98
      %p102 = scmp.eq.s32.totalorder %s27, 0
      %p103 = por %p101, %p102
      %p104 = scmp.ne.s32.totalorder %s96, %s98
      %p105 = scmp.eq.s32.totalorder %s32, 1
      %p106 = por %p104, %p105
      %p107 = scmp.ne.s32.totalorder %s98, %s99
      %p108 = scmp.eq.s32.totalorder %s32, 0
      %p109 = por %p107, %p108
      %p110 = scmp.ne.s32.totalorder %s98, %s99
      %p111 = scmp.eq.s32.totalorder %s33, 1
      %p112 = por %p110, %p111
      %p114 = scmp.ne.s32.totalorder %s99, %s113
      %p115 = scmp.eq.s32.totalorder %s33, 0
      %p116 = por %p114, %p115
      %s118 = sadd.s32 %s117, 1
      %p121 = scmp.eq.s32.totalorder %s27, 1
      %p122 = scmp.ne.s32.totalorder %s117, %s119
      %p123 = scmp.eq.s32.totalorder %s27, 0
      %p124 = por %p122, %p123
      %p125 = scmp.ne.s32.totalorder %s117, %s119
      %p126 = scmp.eq.s32.totalorder %s32, 1
      %p127 = por %p125, %p126
      %p128 = scmp.ne.s32.totalorder %s119, %s120
      %p129 = scmp.eq.s32.totalorder %s32, 0
      %p130 = por %p128, %p129
      %p131 = scmp.ne.s32.totalorder %s119, %s120
      %p132 = scmp.eq.s32.totalorder %s33, 1
      %p133 = por %p131, %p132
      %p135 = scmp.ne.s32.totalorder %s120, %s134
      %p136 = scmp.eq.s32.totalorder %s33, 0
      %p137 = por %p135, %p136
      %s138 = ssub.s32 %s34, %s46
      %s139 = ssub.s32 %s35, %s42
      %s140 = sor.u32 %s138, %s139
      %p141 = scmp.eq.s32.totalorder %s140, 0
      %s143 = sadd.s32 %s142, 1
      %s144 = scalar_select %p141, %s142, %s143
      %p147 = pneg %p141
      %p148 = scmp.eq.s32.totalorder %s27, 1
      %p149 = por %p147, %p148
      %p150 = scmp.ne.s32.totalorder %s142, %s145
      %p151 = scmp.eq.s32.totalorder %s27, 0
      %p152 = por %p150, %p151
      %p153 = scmp.ne.s32.totalorder %s142, %s145
      %p154 = scmp.eq.s32.totalorder %s32, 1
      %p155 = por %p153, %p154
      %p156 = scmp.ne.s32.totalorder %s145, %s146
      %p157 = scmp.eq.s32.totalorder %s32, 0
      %p158 = por %p156, %p157
      %p159 = scmp.ne.s32.totalorder %s145, %s146
      %p160 = scmp.eq.s32.totalorder %s33, 1
      %p161 = por %p159, %p160
      %p163 = scmp.ne.s32.totalorder %s146, %s162
      %p164 = scmp.eq.s32.totalorder %s33, 0
      %p165 = por %p163, %p164
      %s166 = ssub.s32 %s34, %s46
      %s167 = ssub.s32 %s35, %s42
      %s168 = sor.u32 %s166, %s167
      %p169 = scmp.eq.s32.totalorder %s168, 0
      %s171 = sadd.s32 %s170, 1
      %s172 = scalar_select %p169, %s170, %s171
      %p175 = pneg %p169
      %p176 = scmp.eq.s32.totalorder %s27, 1
      %p177 = por %p175, %p176
      %p178 = scmp.ne.s32.totalorder %s170, %s173
      %p179 = scmp.eq.s32.totalorder %s27, 0
      %p180 = por %p178, %p179
      %p181 = scmp.ne.s32.totalorder %s170, %s173
      %p182 = scmp.eq.s32.totalorder %s32, 1
      %p183 = por %p181, %p182
      %p184 = scmp.ne.s32.totalorder %s173, %s174
      %p185 = scmp.eq.s32.totalorder %s32, 0
      %p186 = por %p184, %p185
      %p187 = scmp.ne.s32.totalorder %s173, %s174
      %p188 = scmp.eq.s32.totalorder %s33, 1
      %p189 = por %p187, %p188
      %p191 = scmp.ne.s32.totalorder %s174, %s190
      %p192 = scmp.eq.s32.totalorder %s33, 0
      %p193 = por %p191, %p192
      %s194 = ssub.s32 %s34, %s46
      %s195 = ssub.s32 %s35, %s42
      %s196 = sor.u32 %s194, %s195
      %p197 = scmp.eq.s32.totalorder %s196, 0
      %s199 = sadd.s32 %s198, 1
      %s200 = scalar_select %p197, %s198, %s199
      %p203 = pneg %p197
      %p204 = scmp.eq.s32.totalorder %s27, 1
      %p205 = por %p203, %p204
      %p206 = scmp.ne.s32.totalorder %s198, %s201
      %p207 = scmp.eq.s32.totalorder %s27, 0
      %p208 = por %p206, %p207
      %p209 = scmp.ne.s32.totalorder %s198, %s201
      %p210 = scmp.eq.s32.totalorder %s32, 1
      %p211 = por %p209, %p210
      %p212 = scmp.ne.s32.totalorder %s201, %s202
      %p213 = scmp.eq.s32.totalorder %s32, 0
      %p214 = por %p212, %p213
      %p215 = scmp.ne.s32.totalorder %s201, %s202
      %p216 = scmp.eq.s32.totalorder %s33, 1
      %p217 = por %p215, %p216
      %p219 = scmp.ne.s32.totalorder %s202, %s218
      %p220 = scmp.eq.s32.totalorder %s33, 0
      %p221 = por %p219, %p220
      %s222 = ssub.s32 %s34, %s46
      %s223 = ssub.s32 %s35, %s42
      %s224 = sor.u32 %s222, %s223
      %p225 = scmp.eq.s32.totalorder %s224, 0
      %s227 = sadd.s32 %s226, 1
      %s228 = scalar_select %p225, %s226, %s227
      %p231 = pneg %p225
      %p232 = scmp.eq.s32.totalorder %s27, 1
      %p233 = por %p231, %p232
      %p234 = scmp.ne.s32.totalorder %s226, %s229
      %p235 = scmp.eq.s32.totalorder %s27, 0
      %p236 = por %p234, %p235
      %p237 = scmp.ne.s32.totalorder %s226, %s229
      %p238 = scmp.eq.s32.totalorder %s32, 1
      %p239 = por %p237, %p238
      %p240 = scmp.ne.s32.totalorder %s229, %s230
      %p241 = scmp.eq.s32.totalorder %s32, 0
      %p242 = por %p240, %p241
      %p243 = scmp.ne.s32.totalorder %s229, %s230
      %p244 = scmp.eq.s32.totalorder %s33, 1
      %p245 = por %p243, %p244
      %p247 = scmp.ne.s32.totalorder %s230, %s246
      %p248 = scmp.eq.s32.totalorder %s33, 0
      %p249 = por %p247, %p248
      %p250 = scmp.le.s32.totalorder 1, %s27
      %p251 = scmp.lt.s32.totalorder %s27, 3
      %p252 = pnand %p250, %p251
      %p253 = pneg %p252
      // Predicated region
      $region9: #{tpu_custom_call.1} parent=5 // pred_check
        _
      $region10: #{tpu_custom_call.1} parent=5 // pred_check_branch
        %255 = sbr.rel (%p252) target = $region12
      $region11: #{tpu_custom_call.1} parent=5 // pred_region
        %s256 = ssub.s32 %s27, 1
        // Predicated region
        $region13: #{tpu_custom_call.1} parent=11 // pred_check
          %p257 = pneg %p88
        $region14: #{tpu_custom_call.1} parent=11 // pred_check_branch
          %259 = sbr.rel (%p257) target = $region16
        $region15: #{tpu_custom_call.1} parent=11 // pred_region
          _
        $region16: #{tpu_custom_call.1} parent=11 // pred_fallthru
          _
        // Predicated region
        $region17: #{tpu_custom_call.1} parent=11 // pred_check
          %p260 = pneg %p109
        $region18: #{tpu_custom_call.1} parent=11 // pred_check_branch
          %262 = sbr.rel (%p260) target = $region20
        $region19: #{tpu_custom_call.1} parent=11 // pred_region
          %s264 = ssub.s32 768, 768
          %265 = vsyncadd [#allocation6], %s264
          %s266 = sshll.u32 [#allocation5], 4
          %s267 = int_to_ptr.vmem [resolvable:$true] %s266
          %272 = dma.hbm_to_vmem [thread:$0]  %s2, 768, %s267, [#allocation6], 192, 192, 12
        $region20: #{tpu_custom_call.1} parent=11 // pred_fallthru
          _
        // Predicated region
        $region21: #{tpu_custom_call.1} parent=11 // pred_check
          %p273 = pneg %p130
        $region22: #{tpu_custom_call.1} parent=11 // pred_check_branch
          %275 = sbr.rel (%p273) target = $region24
        $region23: #{tpu_custom_call.1} parent=11 // pred_region
          _
        $region24: #{tpu_custom_call.1} parent=11 // pred_fallthru
          _
      $region12: #{tpu_custom_call.1} parent=5 // pred_fallthru
        _
      %p276 = scmp.lt.s32.totalorder %s27, 2
      // Predicated region
      $region25: #{tpu_custom_call.1} parent=5 // pred_check
        %p277 = pneg %p276
      $region26: #{tpu_custom_call.1} parent=5 // pred_check_branch
        %279 = sbr.rel (%p277) target = $region28
      $region27: #{tpu_custom_call.1} parent=5 // pred_region
        // Predicated region
        $region29: #{tpu_custom_call.1} parent=27 // pred_check
          %p280 = pneg %p61
        $region30: #{tpu_custom_call.1} parent=27 // pred_check_branch
          %282 = sbr.rel (%p280) target = $region32
        $region31: #{tpu_custom_call.1} parent=27 // pred_region
          %s283 = sand.u32 %s51, 1
          %s284 = scalar_lea.sflag [#allocation3], %s283
          %s285 = sand.u32 %s51, 1
          %s286 = smul.addr %s285, 8
          %s287 = scalar_lea.vmem [#allocation2], %s286
          %s289 = ssub.s32 128, 128
          %290 = vsyncadd %s284, %s289
          %s291 = sadd.s32 %s35, %s34
          %s292 = smul.addr %s291, 128
          %s293 = scalar_lea.hbm %s0, %s292
          %s295 = sshll.u32 %s287, 4
          %s296 = int_to_ptr.vmem [resolvable:$true] %s295
          %298 = dma.hbm_to_vmem [thread:$0]  %s293, 128, %s296, %s284
        $region32: #{tpu_custom_call.1} parent=27 // pred_fallthru
          _
      $region28: #{tpu_custom_call.1} parent=5 // pred_fallthru
        _
      %p299 = scmp.le.s32.totalorder 1, %s27
      %p300 = scmp.lt.s32.totalorder %s27, 3
      %p301 = pnand %p299, %p300
      %p302 = pneg %p301
      // Predicated region
      $region33: #{tpu_custom_call.1} parent=5 // pred_check
        _
      $region34: #{tpu_custom_call.1} parent=5 // pred_check_branch
        %304 = sbr.rel (%p301) target = $region36
      $region35: #{tpu_custom_call.1} parent=5 // pred_region
        %s305 = ssub.s32 %s27, 1
        %s306 = sand.u32 %s54, 1
        %s307 = scalar_lea.sflag [#allocation3], %s306
        %s308 = sand.u32 %s54, 1
        %s309 = smul.addr %s308, 8
        %s310 = scalar_lea.vmem [#allocation2], %s309
        // Predicated region
        $region37: #{tpu_custom_call.1} parent=35 // pred_check
          %p311 = pneg %p67
        $region38: #{tpu_custom_call.1} parent=35 // pred_check_branch
          %313 = sbr.rel (%p311) target = $region40
        $region39: #{tpu_custom_call.1} parent=35 // pred_region
          %314 = dma.done %s307, 128
        $region40: #{tpu_custom_call.1} parent=35 // pred_fallthru
          _
        // Predicated region
        $region41: #{tpu_custom_call.1} parent=35 // pred_check
          %p315 = pneg %p109
        $region42: #{tpu_custom_call.1} parent=35 // pred_check_branch
          %317 = sbr.rel (%p315) target = $region44
        $region43: #{tpu_custom_call.1} parent=35 // pred_region
          %318 = dma.done [#allocation6], 768
        $region44: #{tpu_custom_call.1} parent=35 // pred_fallthru
          _
        %s319 = sand.u32 %s54, 1
        %s320 = scalar_lea.sflag [#allocation3], %s319
        %s321 = sand.u32 %s54, 1
        %s322 = smul.addr %s321, 8
        %s323 = scalar_lea.vmem [#allocation2], %s322
        %p324 = pneg %p67
        %p325 = pneg %p64
        %p326 = pneg %p88
        %p327 = pneg %p85
        %p328 = pneg %p109
        %p329 = pneg %p106
        %p330 = pneg %p130
        %p331 = pneg %p127
        %p332 = pneg %p158
        %p333 = pneg %p155
        %s334 = sand.u32 %s145, 1
        %s335 = scalar_lea.sflag [#allocation4], %s334
        %s336 = sand.u32 %s145, 1
        %s337 = smul.addr %s336, 4
        %s338 = scalar_lea.vmem [#allocation7], %s337
        %p339 = pneg %p186
        %p340 = pneg %p183
        %s341 = sand.u32 %s32, 1
        %s342 = scalar_lea.sflag [#allocation9], %s341
        %s343 = sand.u32 %s173, 1
        %s344 = smul.addr %s343, 4
        %s345 = scalar_lea.vmem [#allocation8], %s344
        %p346 = pneg %p214
        %p347 = pneg %p211
        %s348 = sand.u32 %s32, 1
        %s349 = scalar_lea.sflag [#allocation9], %s348
        %s350 = sand.u32 %s201, 1
        %s351 = smul.addr %s350, 4
        %s352 = scalar_lea.vmem [#allocation10], %s351
        %p353 = pneg %p242
        %p354 = pneg %p239
        %s355 = sand.u32 %s229, 1
        %s356 = scalar_lea.sflag [#allocation12], %s355
        %s357 = sand.u32 %s229, 1
        %s358 = smul.addr %s357, 8
        %s359 = scalar_lea.vmem [#allocation11], %s358
        %v361 = vld [vmem:[%s310] sm:$0xff]
        %v362 = vmul.f32 %v361, %v361
        %vm363 = vcmask 261120
        %v364 = vsel %vm363, %v362, 0.0
        %365 = vadd.xlane.f32.xlu0 %v364
        %v366 = vpop.xlane.xlu0 %365
        %v367 = vmax.f32 %v366, 1e-24
        %v368 = vrsqrt.pop %v367
        %v369 = vmul.f32 %v361, %v368
        %v370 = vld [vmem:[%s1] sm:$0x1]
        %v372 = vlaneseq
        %v373 = vshrl.u32 %v372, 7
        %v374 = vsub.s32 0, %v373
        %v375 = vrot.slane %v370, %v374
        %v377 = vmul.f32 %v369, %v375
        %v378 = vpack.c.bf16 %v377, %v377
        %v379 = vld [vmem:[#allocation5] sm:$0xff]
        %v380 = vld [vmem:[#allocation5 + $0x8] sm:$0xf]
        %v381 = vld [vmem:[#allocation5 + $0xc] sm:$0xff]
        %v382 = vld [vmem:[#allocation5 + $0x14] sm:$0xf]
        %v383 = vld [vmem:[#allocation5 + $0x18] sm:$0xff]
        %v384 = vld [vmem:[#allocation5 + $0x20] sm:$0xf]
        %v385 = vld [vmem:[#allocation5 + $0x24] sm:$0xff]
        %v386 = vld [vmem:[#allocation5 + $0x2c] sm:$0xf]
        %v395 = vunpack.c.l.b16 %v379
        %v396 = vunpack.c.h.b16 %v379
        %v397 = vunpack.c.l.b16 %v380
        %v398 = vunpack.c.l.b16 %v381
        %v399 = vunpack.c.h.b16 %v381
        %v400 = vunpack.c.l.b16 %v382
        %v401 = vunpack.c.l.b16 %v383
        %v402 = vunpack.c.h.b16 %v383
        %v403 = vunpack.c.l.b16 %v384
        %v404 = vunpack.c.l.b16 %v385
        %v405 = vunpack.c.h.b16 %v385
        %v406 = vunpack.c.l.b16 %v386
        %v407 = vpack.c.b16 %v398, %v395
        %v408 = vpack.c.b16 %v399, %v396
        %v409 = vpack.c.b16 %v400, %v397
        %v410 = vpack.c.b16 %v404, %v401
        %v411 = vpack.c.b16 %v405, %v402
        %v412 = vpack.c.b16 %v406, %v403
        %v420 = vsel %vm363, %v378, 0
        %422 = vmatprep.subr.bf16.mxu0 %v408
        %423 = vmatpush1.bf16.msra.mxu0 %v407
        %424 = vmatprep.subr.bf16.mxu0 %v411
        %425 = vmatpush1.bf16.msra.mxu0 %v410
        %426 = vmatprep.subr.bf16.mxu0 0
        %427 = vmatpush1.bf16.msra.mxu0 0
        %428 = vmatprep.subr.bf16.mxu0 0
        %429 = vmatpush1.bf16.msra.mxu0 0
        %430 = vmatprep.subr.bf16.mxu0 0
        %431 = vmatpush1.bf16.msra.mxu0 0
        %432 = vmatprep.subr.bf16.mxu0 0
        %433 = vmatpush1.bf16.msra.mxu0 0
        %434 = vmatprep.subr.bf16.mxu0 0
        %435 = vmatpush1.bf16.msra.mxu0 0
        %436 = vmatprep.subr.bf16.mxu0 0
        %437 = vmatpush1.bf16.msra.mxu0 0
        %438 = vmatprep.subr.bf16.mxu0 0
        %439 = vmatpush1.bf16.msra.mxu0 0
        %440 = vmatprep.subr.bf16.mxu0 0
        %441 = vmatpush1.bf16.msra.mxu0 0
        %442 = vmatprep.subr.bf16.mxu0 0
        %443 = vmatpush1.bf16.msra.mxu0 0
        %444 = vmatprep.subr.bf16.mxu0 0
        %445 = vmatpush1.bf16.msra.mxu0 0
        %446 = vmatprep.subr.bf16.mxu0 0
        %447 = vmatpush1.bf16.msra.mxu0 0
        %448 = vmatprep.subr.bf16.mxu0 0
        %449 = vmatpush1.bf16.msra.mxu0 0
        %450 = vmatprep.subr.bf16.mxu0 0
        %451 = vmatpush1.bf16.msra.mxu0 0
        %452 = vmatprep.subr.bf16.mxu0 0
        %453 = vmatpush1.bf16.msra.mxu0 0
        %454 = vmatprep.mubr.bf16.mxu0 0
        %455 = vmatmul.mubr.bf16.gmra.mrb[0].mxu0 %v420
        %v456 = vpop.f32.mrb[0].mxu0
        %v457 = vadd.f32 0.0, %v456
        %v458 = vpop.f32.mrb[0].mxu0
        %v459 = vadd.f32 0.0, %v458
        %v460 = vpop.f32.mrb[0].mxu0
        %v461 = vpop.f32.mrb[0].mxu0
        %462 = vdwg.mxu0
        %463 = vmatprep.subr.bf16.mxu0 0
        %464 = vmatpush1.bf16.msra.mxu0 %v409
        %465 = vmatprep.subr.bf16.mxu0 0
        %466 = vmatpush1.bf16.msra.mxu0 %v412
        %467 = vmatprep.subr.bf16.mxu0 0
        %468 = vmatpush1.bf16.msra.mxu0 0
        %469 = vmatprep.subr.bf16.mxu0 0
        %470 = vmatpush1.bf16.msra.mxu0 0
        %471 = vmatprep.subr.bf16.mxu0 0
        %472 = vmatpush1.bf16.msra.mxu0 0
        %473 = vmatprep.subr.bf16.mxu0 0
        %474 = vmatpush1.bf16.msra.mxu0 0
        %475 = vmatprep.subr.bf16.mxu0 0
        %476 = vmatpush1.bf16.msra.mxu0 0
        %477 = vmatprep.subr.bf16.mxu0 0
        %478 = vmatpush1.bf16.msra.mxu0 0
        %479 = vmatprep.subr.bf16.mxu0 0
        %480 = vmatpush1.bf16.msra.mxu0 0
        %481 = vmatprep.subr.bf16.mxu0 0
        %482 = vmatpush1.bf16.msra.mxu0 0
        %483 = vmatprep.subr.bf16.mxu0 0
        %484 = vmatpush1.bf16.msra.mxu0 0
        %485 = vmatprep.subr.bf16.mxu0 0
        %486 = vmatpush1.bf16.msra.mxu0 0
        %487 = vmatprep.subr.bf16.mxu0 0
        %488 = vmatpush1.bf16.msra.mxu0 0
        %489 = vmatprep.subr.bf16.mxu0 0
        %490 = vmatpush1.bf16.msra.mxu0 0
        %491 = vmatprep.subr.bf16.mxu0 0
        %492 = vmatpush1.bf16.msra.mxu0 0
        %493 = vmatprep.subr.bf16.mxu0 0
        %494 = vmatpush1.bf16.msra.mxu0 0
        %495 = vmatprep.mubr.bf16.mxu0 0
        %496 = vmatmul.mubr.bf16.gmra.mrb[0].mxu0 %v420
        %v497 = vpop.f32.mrb[0].mxu0
        %v498 = vadd.f32 0.0, %v497
        %v499 = vpop.f32.mrb[0].mxu0
        %v500 = vpop.f32.mrb[0].mxu0
        %v501 = vpop.f32.mrb[0].mxu0
        %502 = vdwg.mxu0
        %v503 = vpack.c.bf16 %v457, %v457
        %vm504 = vcmask 519168
        %505 = vst.msk [vmem:[%s338] sm:$0xf] %vm504, %v503
        %v507 = vunpack.c.l.b16 %v503
        %v508 = vpack.c.b16 %v507, %v507
        %509 = vrot.lane.b32.xlu0 %v508, 64
        %v510 = vpop.permute.xlu0 %509
        %512 = vst.msk [vmem:[%s345] sm:$0xf] %vm504, %v510
        %v513 = vpack.c.bf16 %v459, %v459
        %514 = vst.msk [vmem:[%s352] sm:$0xf] %vm504, %v513
        %v515 = vld [vmem:[%s3] sm:$0x1]
        %v517 = vlaneseq
        %v518 = vshrl.u32 %v517, 7
        %v519 = vsub.s32 0, %v518
        %v520 = vrot.slane %v515, %v519
        %521 = vrot.lane.b32.xlu0 %v520, 64
        %v522 = vpop.permute.xlu0 %521
        %v524 = vadd.f32 %v459, %v522
        %v525 = vadd.f32 %v498, %v522
        %v526 = vxor.u32 %v524, 2147483648
        %v527 = vxor.u32 %v525, 2147483648
        %v528 = vmul.f32 %v526, 1.442695
        %v529 = vpow.pop %v528
        %v530 = vmul.f32 %v527, 1.442695
        %v531 = vpow.pop %v530
        %v532 = vadd.f32 %v529, 1.0
        %v533 = vadd.f32 %v531, 1.0
        %v534 = vrcp.pop %v532
        %v535 = vmul.f32 1.0, %v534
        %v536 = vrcp.pop %v533
        %v537 = vmul.f32 1.0, %v536
        %540 = vrot.lane.b32.xlu0 %v535, 64
        %v541 = vpop.permute.xlu0 %540
        %542 = vrot.lane.b32.xlu0 %v537, 64
        %v543 = vpop.permute.xlu0 %542
        %vm544 = vcmask 523264
        %v545 = vsel %vm544, %v541, %v543
        %547 = vst [vmem:[%s359] sm:$0xff] %v545
        %s548 = sand.u32 %s145, 1
        %s549 = scalar_lea.sflag [#allocation4], %s548
        %s550 = sand.u32 %s145, 1
        %s551 = smul.addr %s550, 4
        %s552 = scalar_lea.vmem [#allocation7], %s551
        %s553 = sand.u32 %s32, 1
        %s554 = scalar_lea.sflag [#allocation9], %s553
        %s555 = sand.u32 %s173, 1
        %s556 = smul.addr %s555, 4
        %s557 = scalar_lea.vmem [#allocation8], %s556
        %s558 = sand.u32 %s32, 1
        %s559 = scalar_lea.sflag [#allocation9], %s558
        %s560 = sand.u32 %s201, 1
        %s561 = smul.addr %s560, 4
        %s562 = scalar_lea.vmem [#allocation10], %s561
        %s563 = sand.u32 %s229, 1
        %s564 = scalar_lea.sflag [#allocation12], %s563
        %s565 = sand.u32 %s229, 1
        %s566 = smul.addr %s565, 8
        %s567 = scalar_lea.vmem [#allocation11], %s566
        // Predicated region
        $region45: #{tpu_custom_call.1} parent=35 // pred_check
          %p568 = pneg %p155
        $region46: #{tpu_custom_call.1} parent=35 // pred_check_branch
          %570 = sbr.rel (%p568) target = $region48
        $region47: #{tpu_custom_call.1} parent=35 // pred_region
          %s572 = ssub.s32 64, 64
          %573 = vsyncadd %s549, %s572
          %s574 = sadd.s32 %s37, %s36
          %s575 = smul.addr %s574, 64
          %s576 = scalar_lea.hbm %s4, %s575
          %s578 = sshll.u32 %s552, 4
          %s579 = int_to_ptr.vmem [resolvable:$true] %s578
          %581 = dma.vmem_to_hbm [thread:$0]  %s579, 64, %s576, %s549
        $region48: #{tpu_custom_call.1} parent=35 // pred_fallthru
          _
        // Predicated region
        $region49: #{tpu_custom_call.1} parent=35 // pred_check
          %p582 = pneg %p183
        $region50: #{tpu_custom_call.1} parent=35 // pred_check_branch
          %584 = sbr.rel (%p582) target = $region52
        $region51: #{tpu_custom_call.1} parent=35 // pred_region
          %s586 = ssub.s32 64, 64
          %587 = vsyncadd %s554, %s586
          %s588 = sadd.s32 %s37, %s36
          %s589 = smul.addr %s588, 64
          %s590 = scalar_lea.hbm %s5, %s589
          %s592 = sshll.u32 %s557, 4
          %s593 = int_to_ptr.vmem [resolvable:$true] %s592
          %595 = dma.vmem_to_hbm [thread:$0]  %s593, 64, %s590, %s554
        $region52: #{tpu_custom_call.1} parent=35 // pred_fallthru
          _
        // Predicated region
        $region53: #{tpu_custom_call.1} parent=35 // pred_check
          %p596 = pneg %p211
        $region54: #{tpu_custom_call.1} parent=35 // pred_check_branch
          %598 = sbr.rel (%p596) target = $region56
        $region55: #{tpu_custom_call.1} parent=35 // pred_region
          %s600 = ssub.s32 64, 64
          %601 = vsyncadd %s559, %s600
          %s602 = sadd.s32 %s37, %s36
          %s603 = smul.addr %s602, 64
          %s604 = scalar_lea.hbm %s6, %s603
          %s606 = sshll.u32 %s562, 4
          %s607 = int_to_ptr.vmem [resolvable:$true] %s606
          %609 = dma.vmem_to_hbm [thread:$0]  %s607, 64, %s604, %s559
        $region56: #{tpu_custom_call.1} parent=35 // pred_fallthru
          _
        // Predicated region
        $region57: #{tpu_custom_call.1} parent=35 // pred_check
          %p610 = pneg %p239
        $region58: #{tpu_custom_call.1} parent=35 // pred_check_branch
          %612 = sbr.rel (%p610) target = $region60
        $region59: #{tpu_custom_call.1} parent=35 // pred_region
          %s614 = ssub.s32 128, 128
          %615 = vsyncadd %s564, %s614
          %s616 = sadd.s32 %s37, %s36
          %s617 = smul.addr %s616, 128
          %s618 = scalar_lea.hbm %s7, %s617
          %s620 = sshll.u32 %s567, 4
          %s621 = int_to_ptr.vmem [resolvable:$true] %s620
          %623 = dma.vmem_to_hbm [thread:$0]  %s621, 128, %s618, %s564
        $region60: #{tpu_custom_call.1} parent=35 // pred_fallthru
          _
      $region36: #{tpu_custom_call.1} parent=5 // pred_fallthru
        _
      %p624 = scmp.le.s32.totalorder 2, %s27
      // Predicated region
      $region61: #{tpu_custom_call.1} parent=5 // pred_check
        %p625 = pneg %p624
      $region62: #{tpu_custom_call.1} parent=5 // pred_check_branch
        %627 = sbr.rel (%p625) target = $region64
      $region63: #{tpu_custom_call.1} parent=5 // pred_region
        %s628 = ssub.s32 %s27, 2
        // Predicated region
        $region65: #{tpu_custom_call.1} parent=63 // pred_check
          %p629 = pneg %p161
        $region66: #{tpu_custom_call.1} parent=63 // pred_check_branch
          %631 = sbr.rel (%p629) target = $region68
        $region67: #{tpu_custom_call.1} parent=63 // pred_region
          %s632 = sand.u32 %s146, 1
          %s633 = scalar_lea.sflag [#allocation4], %s632
          %s634 = sand.u32 %s146, 1
          %s635 = smul.addr %s634, 4
          %s636 = scalar_lea.vmem [#allocation7], %s635
          %637 = dma.done %s633, 64
        $region68: #{tpu_custom_call.1} parent=63 // pred_fallthru
          _
        // Predicated region
        $region69: #{tpu_custom_call.1} parent=63 // pred_check
          %p638 = pneg %p189
        $region70: #{tpu_custom_call.1} parent=63 // pred_check_branch
          %640 = sbr.rel (%p638) target = $region72
        $region71: #{tpu_custom_call.1} parent=63 // pred_region
          %s641 = sand.u32 %s33, 1
          %s642 = scalar_lea.sflag [#allocation9], %s641
          %s643 = sand.u32 %s174, 1
          %s644 = smul.addr %s643, 4
          %s645 = scalar_lea.vmem [#allocation8], %s644
          %646 = dma.done %s642, 64
        $region72: #{tpu_custom_call.1} parent=63 // pred_fallthru
          _
        // Predicated region
        $region73: #{tpu_custom_call.1} parent=63 // pred_check
          %p647 = pneg %p217
        $region74: #{tpu_custom_call.1} parent=63 // pred_check_branch
          %649 = sbr.rel (%p647) target = $region76
        $region75: #{tpu_custom_call.1} parent=63 // pred_region
          %s650 = sand.u32 %s33, 1
          %s651 = scalar_lea.sflag [#allocation9], %s650
          %s652 = sand.u32 %s202, 1
          %s653 = smul.addr %s652, 4
          %s654 = scalar_lea.vmem [#allocation10], %s653
          %655 = dma.done %s651, 64
        $region76: #{tpu_custom_call.1} parent=63 // pred_fallthru
          _
        // Predicated region
        $region77: #{tpu_custom_call.1} parent=63 // pred_check
          %p656 = pneg %p245
        $region78: #{tpu_custom_call.1} parent=63 // pred_check_branch
          %658 = sbr.rel (%p656) target = $region80
        $region79: #{tpu_custom_call.1} parent=63 // pred_region
          %s659 = sand.u32 %s230, 1
          %s660 = scalar_lea.sflag [#allocation12], %s659
          %s661 = sand.u32 %s230, 1
          %s662 = smul.addr %s661, 8
          %s663 = scalar_lea.vmem [#allocation11], %s662
          %664 = dma.done %s660, 128
        $region80: #{tpu_custom_call.1} parent=63 // pred_fallthru
          _
      $region64: #{tpu_custom_call.1} parent=5 // pred_fallthru
        _
    $region6: #{tpu_custom_call.1} parent=1 // loop_footer
      %s31 = sadd.s32 1, %s27
    $region7: #{tpu_custom_call.1} parent=1 // loop_footer_branch
      %26 = sbr.rel target = $region3
    $region8: #{tpu_custom_call.1} parent=1 // loop_exit
      _
    %665 = vsyncpa [#allocation3], 1
    %s666 = scalar_lea.sflag [#allocation3], 1
    %667 = vsyncpa %s666, 1
    %668 = vsyncpa [#allocation6], 1
    %669 = vsyncpa [#allocation4], 1
    %s670 = scalar_lea.sflag [#allocation4], 1
    %671 = vsyncpa %s670, 1
    %672 = vsyncpa [#allocation9], 1
    %s673 = scalar_lea.sflag [#allocation9], 1
    %674 = vsyncpa %s673, 1
    %675 = vsyncpa [#allocation12], 1
    %s676 = scalar_lea.sflag [#allocation12], 1
    %677 = vsyncpa %s676, 1

</llo_original>
